<compile_context>
chip_gen: v5e
topology: v5e:2x2
jax: 0.10.0
libtpu: 0.0.40
codegen_flags: <defaults>
</compile_context>

<pallas_src>
import functools

import jax
import jax.numpy as jnp
from jax.experimental import pallas as pl

NUM_LAYERS = 3
NORMALIZE = True
P = 128                      # lane-dense padded feature width
MXU_DTYPE = jnp.bfloat16     # MXU input dtype (accumulation stays f32)


# ----------------------------------------------------------------------------
# Fused Pallas kernel: all NNModel layers in one call
# ----------------------------------------------------------------------------
def _fused_nn_kernel(ats_ref, ainv_ref, ws_ref, wc_ref, b_ref, x_ref, o_ref, *,
                     num_layers: int, normalize: bool):
    ats = ats_ref[...]                                 # [N, Cp]  bf16
    ainv = ainv_ref[...]                               # [Cp, N]  bf16
    h = x_ref[...]                                     # [N, P]   f32 activation
    for l in range(num_layers):
        hb = h.astype(MXU_DTYPE)
        # community pooling (low-rank, no dense [N,N] operator):
        z = jnp.dot(ainv, hb, preferred_element_type=jnp.float32)      # [Cp, P]
        zw = jnp.dot(z.astype(MXU_DTYPE), wc_ref[l],
                     preferred_element_type=jnp.float32)               # [Cp, P]
        com = jnp.dot(ats, zw.astype(MXU_DTYPE),
                      preferred_element_type=jnp.float32)              # [N, P]
        # self term + community term + bias, summed in f32 (no concat fold)
        h = (jnp.dot(hb, ws_ref[l], preferred_element_type=jnp.float32)
             + com + b_ref[l])                                         # [N, P]
        if l < num_layers - 1:
            h = jnp.maximum(h, 0.0)                    # ReLU (ibgnn_args.act_type)
            # dropout p=0.0: eval-mode identity
            if normalize:                              # F.normalize(p=2, dim=-1)
                ss = jnp.sum(h * h, axis=-1, keepdims=True)
                h = h * jax.lax.rsqrt(jnp.maximum(ss, 1e-24))
    o_ref[...] = h.astype(o_ref.dtype)


def _pad2d(a, rows, cols):
    return jnp.pad(a, ((0, rows - a.shape[0]), (0, cols - a.shape[1])))


def _round_up(v, m):
    return ((v + m - 1) // m) * m


def fused_nn_model_pallas(ats, ainv, ws, wc, b, x_pad, *, num_layers, normalize):
    n = x_pad.shape[0]
    c = ats.shape[1]
    kernel = functools.partial(_fused_nn_kernel,
                               num_layers=num_layers, normalize=normalize)
    # Single grid step, full-array blocks (whole working set << 1 MB in VMEM).
    full = lambda shape: pl.BlockSpec(shape, lambda: (0,) * len(shape))
    flops = num_layers * (2 * n * P * P          # self term
                          + 2 * c * n * P        # pooling  ainv @ h
                          + 2 * c * P * P        # pooled @ Wc
                          + 2 * n * c * P)       # scatter  ats @ zw
    bytes_accessed = int(sum(int(a.size) * a.dtype.itemsize
                             for a in (ats, ainv, ws, wc, b, x_pad))
                         + n * P * 4)
    return pl.pallas_call(
        kernel,
        out_shape=jax.ShapeDtypeStruct((n, P), jnp.float32),
        in_specs=[full(ats.shape), full(ainv.shape), full(ws.shape),
                  full(wc.shape), full(b.shape), full(x_pad.shape)],
        out_specs=full((n, P)),
        cost_estimate=pl.CostEstimate(
            flops=flops,
            transcendentals=n * max(num_layers - 1, 0),
            bytes_accessed=bytes_accessed),
    )(ats, ainv, ws, wc, b, x_pad)


# ----------------------------------------------------------------------------
# NNModel: parameter construction, one-time packing, forward (jump=None branch)
# ----------------------------------------------------------------------------
def init_params(key, in_dim, hidden_dim, out_dim, num_layers):
    in_dims = [in_dim] + [hidden_dim] * (num_layers - 1)
    out_dims = [hidden_dim] * (num_layers - 1) + [out_dim]

    def make_layers(key):
        layers = []
        for din, dout in zip(in_dims, out_dims):
            key, k1, k2, k3 = jax.random.split(key, 4)
            scale = 1.0 / jnp.sqrt(jnp.float32(din))
            layers.append((
                jax.random.uniform(k1, (din, dout), jnp.float32, -scale, scale),
                jax.random.uniform(k2, (din, dout), jnp.float32, -scale, scale),
                jax.random.uniform(k3, (1, dout), jnp.float32, -scale, scale),
            ))
        return layers, key

    src, key = make_layers(key)
    dst, key = make_layers(key)
    return {"src": src, "dst": dst}


def pack_params(params, affiliate_times_scale, inv_affiliate_mat, type_):
    """One-time packing of weights + pooling factors (hoisted out of forward)."""
    layers = params["src"] if type_ == "src" else params["dst"]
    n, c = affiliate_times_scale.shape
    n_pad = _round_up(n, 16)          # bf16 sublane packing
    c_pad = max(16, _round_up(c, 16))
    ats_p = _pad2d(affiliate_times_scale, n_pad, c_pad).astype(MXU_DTYPE)
    ainv_p = _pad2d(inv_affiliate_mat, c_pad, n_pad).astype(MXU_DTYPE)
    ws = jnp.stack([_pad2d(w, P, P) for (w, _, _) in layers]).astype(MXU_DTYPE)
    wc = jnp.stack([_pad2d(w, P, P) for (_, w, _) in layers]).astype(MXU_DTYPE)
    b = jnp.stack([_pad2d(bb, 1, P) for (_, _, bb) in layers])      # f32
    return {
        "ats": ats_p, "ainv": ainv_p, "ws": ws, "wc": wc, "b": b,
        "n": n, "n_pad": n_pad, "out_dim": layers[-1][0].shape[1],
        "num_layers": len(layers),
    }


def nn_model_forward(packed, x):
    """Per-call work: pad x, run the fused kernel, slice the result."""
    x_pad = _pad2d(x, packed["n_pad"], P)
    out = fused_nn_model_pallas(
        packed["ats"], packed["ainv"], packed["ws"], packed["wc"], packed["b"],
        x_pad, num_layers=packed["num_layers"], normalize=NORMALIZE)
    return out[:packed["n"], :packed["out_dim"]]


# ----------------------------------------------------------------------------
# Pure-JAX references (for correctness check)
# ----------------------------------------------------------------------------
def nn_model_reference(params, x, ats, ainv, type_):
    """Original (unfused, f32) semantics of NNModel.forward with jump=None."""
    layers = params["src"] if type_ == "src" else params["dst"]
    for (ws, wc, b) in layers[:-1]:
        feat = ainv @ x
        h = x @ ws + ats @ (feat @ wc) + b
        h = jnp.maximum(h, 0.0)
        if NORMALIZE:
            h = h / jnp.maximum(
                jnp.sqrt(jnp.sum(h * h, axis=-1, keepdims=True)), 1e-12)
        x = h
    ws, wc, b = layers[-1]
    feat = ainv @ x
    return x @ ws + ats @ (feat @ wc) + b


def nn_model_emulated(params, x, ats, ainv, type_):
    """Same math as the fused kernel (bf16 MXU inputs, f32 accumulation,
    low-rank pooling) in plain JAX — tight kernel-exactness check."""
    layers = params["src"] if type_ == "src" else params["dst"]
    atsb = ats.astype(MXU_DTYPE)
    ainvb = ainv.astype(MXU_DTYPE)
    h = x
    for i, (ws, wc, b) in enumerate(layers):
        hb = h.astype(MXU_DTYPE)
        z = jnp.dot(ainvb, hb, preferred_element_type=jnp.float32)
        zw = jnp.dot(z.astype(MXU_DTYPE), wc.astype(MXU_DTYPE),
                     preferred_element_type=jnp.float32)
        com = jnp.dot(atsb, zw.astype(MXU_DTYPE),
                      preferred_element_type=jnp.float32)
        h = (jnp.dot(hb, ws.astype(MXU_DTYPE), preferred_element_type=jnp.float32)
             + com + b)
        if i < len(layers) - 1:
            h = jnp.maximum(h, 0.0)
            if NORMALIZE:
                ss = jnp.sum(h * h, axis=-1, keepdims=True)
                h = h * jax.lax.rsqrt(jnp.maximum(ss, 1e-24))
    return h


# ----------------------------------------------------------------------------
if __name__ == "__main__":
    key = jax.random.PRNGKey(0)

    N, C = 64, 8                   # nodes, communities
    IN_DIM, HIDDEN, OUT_DIM = 16, 32, 8

    key, kx, ka = jax.random.split(key, 3)
    x = jax.random.normal(kx, (N, IN_DIM), jnp.float32)

    # affiliation: each node belongs to community (node_id % C)
    memberships = jnp.arange(N) % C
    affiliate = jax.nn.one_hot(memberships, C, dtype=jnp.float32)          # [N, C]
    scale = 0.5 + jax.random.uniform(ka, (1, C), jnp.float32)
    affiliate_times_scale = affiliate * scale                              # [N, C]
    counts = jnp.sum(affiliate, axis=0, keepdims=True)                     # [1, C]
    inv_affiliate_mat = (affiliate / counts).T                             # [C, N]

    params = init_params(key, IN_DIM, HIDDEN, OUT_DIM, NUM_LAYERS)

    # One-time packing (hoisted out of the per-forward path).
    packed = jax.tree_util.tree_map(
        lambda a: jax.block_until_ready(a) if isinstance(a, jax.Array) else a,
        pack_params(params, affiliate_times_scale, inv_affiliate_mat, "src"))
    forward = jax.jit(lambda xx: nn_model_forward(packed, xx))

    out = jax.block_until_ready(forward(x))
    assert out.shape == (N, OUT_DIM)

    # Tight check: kernel matches its own (bf16-MXU, low-rank) math exactly.
    ref_emu = nn_model_emulated(params, x, affiliate_times_scale,
                                inv_affiliate_mat, "src")
    assert jnp.allclose(out, ref_emu, atol=5e-3, rtol=5e-3), \
        "kernel mismatch vs emulated bf16 math"

    # Semantic check: matches the original f32 module within bf16 tolerance.
    ref_f32 = nn_model_reference(params, x, affiliate_times_scale,
                                 inv_affiliate_mat, "src")
    assert jnp.allclose(out, ref_f32, atol=5e-2, rtol=5e-2), \
        "mismatch vs f32 reference"

    print("KERNEL_OK")
</pallas_src>

<mosaic_0001>
module attributes {stable_mosaic.version = 11 : i64} {
  func.func @_fused_nn_kernel(%arg0: memref<64x16xbf16, #tpu.memory_space<vmem>>, %arg1: memref<16x64xbf16, #tpu.memory_space<vmem>>, %arg2: memref<3x128x128xbf16, #tpu.memory_space<vmem>>, %arg3: memref<3x128x128xbf16, #tpu.memory_space<vmem>>, %arg4: memref<3x1x128xf32, #tpu.memory_space<vmem>>, %arg5: memref<64x128xf32, #tpu.memory_space<vmem>>, %arg6: memref<64x128xf32, #tpu.memory_space<vmem>>) attributes {dimension_semantics = [], scalar_prefetch = 0 : i64, scratch_operands = 0 : i64, tpu.core_type = #tpu.core_type<tc>} {
    %c0 = arith.constant 0 : index
    %c0_0 = arith.constant 0 : index
    %0 = vector.load %arg0[%c0, %c0_0] : memref<64x16xbf16, #tpu.memory_space<vmem>>, vector<64x16xbf16>
    %c0_1 = arith.constant 0 : index
    %c0_2 = arith.constant 0 : index
    %1 = vector.load %arg1[%c0_1, %c0_2] : memref<16x64xbf16, #tpu.memory_space<vmem>>, vector<16x64xbf16>
    %c0_3 = arith.constant 0 : index
    %c0_4 = arith.constant 0 : index
    %2 = vector.load %arg5[%c0_3, %c0_4] : memref<64x128xf32, #tpu.memory_space<vmem>>, vector<64x128xf32>
    %3 = arith.truncf %2 : vector<64x128xf32> to vector<64x128xbf16>
    %cst = arith.constant dense<0.000000e+00> : vector<16x128xf32>
    %4 = tpu.matmul %1, %3, %cst {dimension_numbers = #tpu.dot_dimension_numbers<[1], [0], [0], [1], [0, 0, 1, 1], [], []>} : vector<16x64xbf16>, vector<64x128xbf16>, vector<16x128xf32> -> vector<16x128xf32>
    %5 = arith.truncf %4 : vector<16x128xf32> to vector<16x128xbf16>
    %c0_5 = arith.constant 0 : index
    %c0_6 = arith.constant 0 : index
    %c0_7 = arith.constant 0 : index
    %6 = vector.load %arg3[%c0_5, %c0_6, %c0_7] : memref<3x128x128xbf16, #tpu.memory_space<vmem>>, vector<1x128x128xbf16>
    %7 = vector.shape_cast %6 : vector<1x128x128xbf16> to vector<128x128xbf16>
    %cst_8 = arith.constant dense<0.000000e+00> : vector<16x128xf32>
    %8 = tpu.matmul %5, %7, %cst_8 {dimension_numbers = #tpu.dot_dimension_numbers<[1], [0], [0], [1], [0, 0, 1, 1], [], []>} : vector<16x128xbf16>, vector<128x128xbf16>, vector<16x128xf32> -> vector<16x128xf32>
    %9 = arith.truncf %8 : vector<16x128xf32> to vector<16x128xbf16>
    %cst_9 = arith.constant dense<0.000000e+00> : vector<64x128xf32>
    %10 = tpu.matmul %0, %9, %cst_9 {dimension_numbers = #tpu.dot_dimension_numbers<[1], [0], [0], [1], [0, 0, 1, 1], [], []>} : vector<64x16xbf16>, vector<16x128xbf16>, vector<64x128xf32> -> vector<64x128xf32>
    %c0_10 = arith.constant 0 : index
    %c0_11 = arith.constant 0 : index
    %c0_12 = arith.constant 0 : index
    %11 = vector.load %arg2[%c0_10, %c0_11, %c0_12] : memref<3x128x128xbf16, #tpu.memory_space<vmem>>, vector<1x128x128xbf16>
    %12 = vector.shape_cast %11 : vector<1x128x128xbf16> to vector<128x128xbf16>
    %cst_13 = arith.constant dense<0.000000e+00> : vector<64x128xf32>
    %13 = tpu.matmul %3, %12, %cst_13 {dimension_numbers = #tpu.dot_dimension_numbers<[1], [0], [0], [1], [0, 0, 1, 1], [], []>} : vector<64x128xbf16>, vector<128x128xbf16>, vector<64x128xf32> -> vector<64x128xf32>
    %14 = arith.addf %13, %10 : vector<64x128xf32>
    %c0_14 = arith.constant 0 : index
    %c0_15 = arith.constant 0 : index
    %c0_16 = arith.constant 0 : index
    %15 = vector.load %arg4[%c0_14, %c0_15, %c0_16] : memref<3x1x128xf32, #tpu.memory_space<vmem>>, vector<1x1x128xf32>
    %16 = vector.shape_cast %15 : vector<1x1x128xf32> to vector<1x128xf32>
    %17 = vector.broadcast %16 : vector<1x128xf32> to vector<64x128xf32>
    %18 = arith.addf %14, %17 : vector<64x128xf32>
    %cst_17 = arith.constant 0.000000e+00 : f32
    %19 = vector.broadcast %cst_17 : f32 to vector<64x128xf32>
    %20 = arith.maximumf %18, %19 : vector<64x128xf32>
    %21 = arith.mulf %20, %20 : vector<64x128xf32>
    %cst_18 = arith.constant dense<0.000000e+00> : vector<64xf32>
    %22 = vector.multi_reduction <add>, %21, %cst_18 [1] : vector<64x128xf32> to vector<64xf32>
    %23 = vector.shape_cast %22 : vector<64xf32> to vector<64x1xf32>
    %cst_19 = arith.constant 1.000000e-24 : f32
    %24 = vector.broadcast %cst_19 : f32 to vector<64x1xf32>
    %25 = arith.maximumf %23, %24 : vector<64x1xf32>
    %26 = math.rsqrt %25 : vector<64x1xf32>
    %27 = vector.broadcast %26 : vector<64x1xf32> to vector<64x128xf32>
    %28 = arith.mulf %20, %27 : vector<64x128xf32>
    %29 = arith.truncf %28 : vector<64x128xf32> to vector<64x128xbf16>
    %cst_20 = arith.constant dense<0.000000e+00> : vector<16x128xf32>
    %30 = tpu.matmul %1, %29, %cst_20 {dimension_numbers = #tpu.dot_dimension_numbers<[1], [0], [0], [1], [0, 0, 1, 1], [], []>} : vector<16x64xbf16>, vector<64x128xbf16>, vector<16x128xf32> -> vector<16x128xf32>
    %31 = arith.truncf %30 : vector<16x128xf32> to vector<16x128xbf16>
    %c1 = arith.constant 1 : index
    %c0_21 = arith.constant 0 : index
    %c0_22 = arith.constant 0 : index
    %32 = vector.load %arg3[%c1, %c0_21, %c0_22] : memref<3x128x128xbf16, #tpu.memory_space<vmem>>, vector<1x128x128xbf16>
    %33 = vector.shape_cast %32 : vector<1x128x128xbf16> to vector<128x128xbf16>
    %cst_23 = arith.constant dense<0.000000e+00> : vector<16x128xf32>
    %34 = tpu.matmul %31, %33, %cst_23 {dimension_numbers = #tpu.dot_dimension_numbers<[1], [0], [0], [1], [0, 0, 1, 1], [], []>} : vector<16x128xbf16>, vector<128x128xbf16>, vector<16x128xf32> -> vector<16x128xf32>
    %35 = arith.truncf %34 : vector<16x128xf32> to vector<16x128xbf16>
    %cst_24 = arith.constant dense<0.000000e+00> : vector<64x128xf32>
    %36 = tpu.matmul %0, %35, %cst_24 {dimension_numbers = #tpu.dot_dimension_numbers<[1], [0], [0], [1], [0, 0, 1, 1], [], []>} : vector<64x16xbf16>, vector<16x128xbf16>, vector<64x128xf32> -> vector<64x128xf32>
    %c1_25 = arith.constant 1 : index
    %c0_26 = arith.constant 0 : index
    %c0_27 = arith.constant 0 : index
    %37 = vector.load %arg2[%c1_25, %c0_26, %c0_27] : memref<3x128x128xbf16, #tpu.memory_space<vmem>>, vector<1x128x128xbf16>
    %38 = vector.shape_cast %37 : vector<1x128x128xbf16> to vector<128x128xbf16>
    %cst_28 = arith.constant dense<0.000000e+00> : vector<64x128xf32>
    %39 = tpu.matmul %29, %38, %cst_28 {dimension_numbers = #tpu.dot_dimension_numbers<[1], [0], [0], [1], [0, 0, 1, 1], [], []>} : vector<64x128xbf16>, vector<128x128xbf16>, vector<64x128xf32> -> vector<64x128xf32>
    %40 = arith.addf %39, %36 : vector<64x128xf32>
    %c1_29 = arith.constant 1 : index
    %c0_30 = arith.constant 0 : index
    %c0_31 = arith.constant 0 : index
    %41 = vector.load %arg4[%c1_29, %c0_30, %c0_31] : memref<3x1x128xf32, #tpu.memory_space<vmem>>, vector<1x1x128xf32>
    %42 = vector.shape_cast %41 : vector<1x1x128xf32> to vector<1x128xf32>
    %43 = vector.broadcast %42 : vector<1x128xf32> to vector<64x128xf32>
    %44 = arith.addf %40, %43 : vector<64x128xf32>
    %cst_32 = arith.constant 0.000000e+00 : f32
    %45 = vector.broadcast %cst_32 : f32 to vector<64x128xf32>
    %46 = arith.maximumf %44, %45 : vector<64x128xf32>
    %47 = arith.mulf %46, %46 : vector<64x128xf32>
    %cst_33 = arith.constant dense<0.000000e+00> : vector<64xf32>
    %48 = vector.multi_reduction <add>, %47, %cst_33 [1] : vector<64x128xf32> to vector<64xf32>
    %49 = vector.shape_cast %48 : vector<64xf32> to vector<64x1xf32>
    %cst_34 = arith.constant 1.000000e-24 : f32
    %50 = vector.broadcast %cst_34 : f32 to vector<64x1xf32>
    %51 = arith.maximumf %49, %50 : vector<64x1xf32>
    %52 = math.rsqrt %51 : vector<64x1xf32>
    %53 = vector.broadcast %52 : vector<64x1xf32> to vector<64x128xf32>
    %54 = arith.mulf %46, %53 : vector<64x128xf32>
    %55 = arith.truncf %54 : vector<64x128xf32> to vector<64x128xbf16>
    %cst_35 = arith.constant dense<0.000000e+00> : vector<16x128xf32>
    %56 = tpu.matmul %1, %55, %cst_35 {dimension_numbers = #tpu.dot_dimension_numbers<[1], [0], [0], [1], [0, 0, 1, 1], [], []>} : vector<16x64xbf16>, vector<64x128xbf16>, vector<16x128xf32> -> vector<16x128xf32>
    %57 = arith.truncf %56 : vector<16x128xf32> to vector<16x128xbf16>
    %c2 = arith.constant 2 : index
    %c0_36 = arith.constant 0 : index
    %c0_37 = arith.constant 0 : index
    %58 = vector.load %arg3[%c2, %c0_36, %c0_37] : memref<3x128x128xbf16, #tpu.memory_space<vmem>>, vector<1x128x128xbf16>
    %59 = vector.shape_cast %58 : vector<1x128x128xbf16> to vector<128x128xbf16>
    %cst_38 = arith.constant dense<0.000000e+00> : vector<16x128xf32>
    %60 = tpu.matmul %57, %59, %cst_38 {dimension_numbers = #tpu.dot_dimension_numbers<[1], [0], [0], [1], [0, 0, 1, 1], [], []>} : vector<16x128xbf16>, vector<128x128xbf16>, vector<16x128xf32> -> vector<16x128xf32>
    %61 = arith.truncf %60 : vector<16x128xf32> to vector<16x128xbf16>
    %cst_39 = arith.constant dense<0.000000e+00> : vector<64x128xf32>
    %62 = tpu.matmul %0, %61, %cst_39 {dimension_numbers = #tpu.dot_dimension_numbers<[1], [0], [0], [1], [0, 0, 1, 1], [], []>} : vector<64x16xbf16>, vector<16x128xbf16>, vector<64x128xf32> -> vector<64x128xf32>
    %c2_40 = arith.constant 2 : index
    %c0_41 = arith.constant 0 : index
    %c0_42 = arith.constant 0 : index
    %63 = vector.load %arg2[%c2_40, %c0_41, %c0_42] : memref<3x128x128xbf16, #tpu.memory_space<vmem>>, vector<1x128x128xbf16>
    %64 = vector.shape_cast %63 : vector<1x128x128xbf16> to vector<128x128xbf16>
    %cst_43 = arith.constant dense<0.000000e+00> : vector<64x128xf32>
    %65 = tpu.matmul %55, %64, %cst_43 {dimension_numbers = #tpu.dot_dimension_numbers<[1], [0], [0], [1], [0, 0, 1, 1], [], []>} : vector<64x128xbf16>, vector<128x128xbf16>, vector<64x128xf32> -> vector<64x128xf32>
    %66 = arith.addf %65, %62 : vector<64x128xf32>
    %c2_44 = arith.constant 2 : index
    %c0_45 = arith.constant 0 : index
    %c0_46 = arith.constant 0 : index
    %67 = vector.load %arg4[%c2_44, %c0_45, %c0_46] : memref<3x1x128xf32, #tpu.memory_space<vmem>>, vector<1x1x128xf32>
    %68 = vector.shape_cast %67 : vector<1x1x128xf32> to vector<1x128xf32>
    %69 = vector.broadcast %68 : vector<1x128xf32> to vector<64x128xf32>
    %70 = arith.addf %66, %69 : vector<64x128xf32>
    %c0_47 = arith.constant 0 : index
    %c0_48 = arith.constant 0 : index
    %71 = vector.load %arg6[%c0_47, %c0_48] : memref<64x128xf32, #tpu.memory_space<vmem>>, vector<64x128xf32>
    tpu.vector_store %arg6[%c0_47, %c0_48], %70 {strides = array<i32>} : memref<64x128xf32, #tpu.memory_space<vmem>>, vector<64x128xf32>,
    return
  }
}

</mosaic_0001>

<llo_original>
// kernel: _lambda_.1
$region0: #{_lambda_.1}
  #allocation0 [shape = 'u32[]', space=smem, size = 0x4, offset = 0x4, fixed_abs, tag = 'smem constant byte address 0x4 - core index']
  #allocation1 [shape = 'u32[72,128]{1,0:T(1,128)}', space=vmem, size = 0x9000, scoped, tag = 'internal scratch']
  %s0 = inlined_call_operand.hbm [shape: bf16[64,16], index: 0, kind: input, shape index: {}]
  %s1 = inlined_call_operand.vmem [shape: bf16[16,64], index: 1, kind: input, shape index: {}]
  %s2 = inlined_call_operand.hbm [shape: bf16[3,128,128], index: 2, kind: input, shape index: {}]
  %s3 = inlined_call_operand.vmem [shape: bf16[3,128,128], index: 3, kind: input, shape index: {}]
  %s4 = inlined_call_operand.vmem [shape: f32[3,1,128], index: 4, kind: input, shape index: {}]
  %s5 = inlined_call_operand.vmem [shape: f32[64,128], index: 5, kind: input, shape index: {}]
  %s6 = inlined_call_operand.vmem [shape: f32[64,128], index: 6, kind: output, shape index: {}]
  %s7 = sld [smem:[#allocation0]]
  $region42: #{_lambda_.1} parent=0
    _
  %s9 = ssub.s32 1, %s7
  %s10 = scalar_select 0, %s9, %s7
  $region1: #{_lambda_.1} parent=0
    #allocation2 [shape = 'u8[16384]{0}', space=vmem, size = 0x4000, scoped, tag = 'input window, operand 0, single buffered']
    #allocation3 [shape = 's32[1]{0}', space=sflag, size = 0x4, scoped, tag = 'scoped memory for _lambda_.1']
    #allocation4 [shape = 'u8[98304]{0}', space=vmem, size = 0x18000, scoped, tag = 'input window, operand 2, single buffered']
    #allocation5 [shape = 's32[1]{0}', space=sflag, size = 0x4, scoped, tag = 'scoped memory for _lambda_.1']
    %11 = vsyncpa [#allocation3], 0
    %12 = vsyncpa [#allocation5], 0
    // Predicated region
    $region2: #{_lambda_.1} parent=1 // pred_check
      _
    $region3: #{_lambda_.1} parent=1 // pred_check_branch
      %14 = sbr.rel (0) target = $region5
    $region4: #{_lambda_.1} parent=1 // pred_region
      %16 = vsyncadd [#allocation3], 0
      %s17 = sshll.u32 %s0, 4
      %s18 = int_to_ptr.hbm [resolvable:$true] %s17
      %s19 = sshll.u32 [#allocation2], 4
      %s20 = int_to_ptr.vmem [resolvable:$true] %s19
      %25 = dma.hbm_to_vmem [thread:$0]  %s18, 512, %s20, [#allocation3], 64, 64, 4
    $region5: #{_lambda_.1} parent=1 // pred_fallthru
      _
    // Predicated region
    $region6: #{_lambda_.1} parent=1 // pred_check
      _
    $region7: #{_lambda_.1} parent=1 // pred_check_branch
      %27 = sbr.rel (0) target = $region9
    $region8: #{_lambda_.1} parent=1 // pred_region
      _
    $region9: #{_lambda_.1} parent=1 // pred_fallthru
      _
    // Predicated region
    $region10: #{_lambda_.1} parent=1 // pred_check
      _
    $region11: #{_lambda_.1} parent=1 // pred_check_branch
      %29 = sbr.rel (0) target = $region13
    $region12: #{_lambda_.1} parent=1 // pred_region
      %31 = vsyncadd [#allocation5], 0
      %s32 = sshll.u32 %s2, 4
      %s33 = int_to_ptr.hbm [resolvable:$true] %s32
      %s34 = sshll.u32 [#allocation4], 4
      %s35 = int_to_ptr.vmem [resolvable:$true] %s34
      %40 = dma.hbm_to_vmem [thread:$0]  %s33, 3072, %s35, [#allocation5], 64, 64, 4
    $region13: #{_lambda_.1} parent=1 // pred_fallthru
      _
    // Predicated region
    $region14: #{_lambda_.1} parent=1 // pred_check
      _
    $region15: #{_lambda_.1} parent=1 // pred_check_branch
      %42 = sbr.rel (0) target = $region17
    $region16: #{_lambda_.1} parent=1 // pred_region
      _
    $region17: #{_lambda_.1} parent=1 // pred_fallthru
      _
    // Predicated region
    $region18: #{_lambda_.1} parent=1 // pred_check
      _
    $region19: #{_lambda_.1} parent=1 // pred_check_branch
      %44 = sbr.rel (0) target = $region21
    $region20: #{_lambda_.1} parent=1 // pred_region
      _
    $region21: #{_lambda_.1} parent=1 // pred_fallthru
      _
    // Predicated region
    $region22: #{_lambda_.1} parent=1 // pred_check
      _
    $region23: #{_lambda_.1} parent=1 // pred_check_branch
      %46 = sbr.rel (0) target = $region25
    $region24: #{_lambda_.1} parent=1 // pred_region
      _
    $region25: #{_lambda_.1} parent=1 // pred_fallthru
      _
    // Predicated region
    $region26: #{_lambda_.1} parent=1 // pred_check
      _
    $region27: #{_lambda_.1} parent=1 // pred_check_branch
      %48 = sbr.rel (0) target = $region29
    $region28: #{_lambda_.1} parent=1 // pred_region
      %50 = dma.done [#allocation3], 512
    $region29: #{_lambda_.1} parent=1 // pred_fallthru
      _
    // Predicated region
    $region30: #{_lambda_.1} parent=1 // pred_check
      _
    $region31: #{_lambda_.1} parent=1 // pred_check_branch
      %52 = sbr.rel (0) target = $region33
    $region32: #{_lambda_.1} parent=1 // pred_region
      %54 = dma.done [#allocation5], 3072
    $region33: #{_lambda_.1} parent=1 // pred_fallthru
      _
    %v56 = vld [vmem:[#allocation2] sm:$0xf]
    %v57 = vld [vmem:[#allocation2 + $0x4] sm:$0xf]
    %v58 = vld [vmem:[#allocation2 + $0x8] sm:$0xf]
    %v59 = vld [vmem:[#allocation2 + $0xc] sm:$0xf]
    %v60 = vld [vmem:[#allocation2 + $0x10] sm:$0xf]
    %v61 = vld [vmem:[#allocation2 + $0x14] sm:$0xf]
    %v62 = vld [vmem:[#allocation2 + $0x18] sm:$0xf]
    %v63 = vld [vmem:[#allocation2 + $0x1c] sm:$0xf]
    %v64 = vld [vmem:[%s1] sm:$0xf]
    %v65 = vld [vmem:[%s1 + $0x4] sm:$0xf]
    %v66 = vld [vmem:[%s5] sm:$0xff]
    %v67 = vld [vmem:[%s5 + $0x8] sm:$0xff]
    %v68 = vld [vmem:[%s5 + $0x10] sm:$0xff]
    %v69 = vld [vmem:[%s5 + $0x18] sm:$0xff]
    %v70 = vld [vmem:[%s5 + $0x20] sm:$0xff]
    %v71 = vld [vmem:[%s5 + $0x28] sm:$0xff]
    %v72 = vld [vmem:[%s5 + $0x30] sm:$0xff]
    %v73 = vld [vmem:[%s5 + $0x38] sm:$0xff]
    %v74 = vpack.c.bf16 %v67, %v66
    %v75 = vpack.c.bf16 %v69, %v68
    %v76 = vpack.c.bf16 %v71, %v70
    %v77 = vpack.c.bf16 %v73, %v72
    %v80 = vunpack.c.l.b16 %v64
    %v81 = vunpack.c.l.b16 %v65
    %v82 = vpack.c.b16 %v81, %v80
    %vm83 = vcmask 523264
    %v85 = vsel %vm83, %v82, 0
    %87 = vmatpush.bf16.msra.mxu0 0
    %88 = vmatpush.bf16.msra.mxu0 0
    %89 = vmatpush.bf16.msra.mxu0 0
    %90 = vmatpush.bf16.msra.mxu0 0
    %91 = vmatpush.bf16.msra.mxu0 %v77
    %92 = vmatpush.bf16.msra.mxu0 %v76
    %93 = vmatpush.bf16.msra.mxu0 %v75
    %94 = vmatpush.bf16.msra.mxu0 %v74
    %95 = vmatmul.bf16.gmra.mxu0 %v85
    %v96 = vpop.f32.mrf.mxu0
    %v97 = vadd.f32 0.0, %v96
    %v98 = vpop.f32.mrf.mxu0
    %v99 = vadd.f32 0.0, %v98
    %100 = vdwg.mxu0
    %v101 = vpack.c.bf16 %v99, %v97
    %v102 = vld [vmem:[%s3] sm:$0xf]
    %v103 = vld [vmem:[%s3 + $0x4] sm:$0xf]
    %v104 = vld [vmem:[%s3 + $0x8] sm:$0xf]
    %v105 = vld [vmem:[%s3 + $0xc] sm:$0xf]
    %v106 = vld [vmem:[%s3 + $0x10] sm:$0xf]
    %v107 = vld [vmem:[%s3 + $0x14] sm:$0xf]
    %v108 = vld [vmem:[%s3 + $0x18] sm:$0xf]
    %v109 = vld [vmem:[%s3 + $0x1c] sm:$0xf]
    %v110 = vld [vmem:[%s3 + $0x20] sm:$0xf]
    %v111 = vld [vmem:[%s3 + $0x24] sm:$0xf]
    %v112 = vld [vmem:[%s3 + $0x28] sm:$0xf]
    %v113 = vld [vmem:[%s3 + $0x2c] sm:$0xf]
    %v114 = vld [vmem:[%s3 + $0x30] sm:$0xf]
    %v115 = vld [vmem:[%s3 + $0x34] sm:$0xf]
    %v116 = vld [vmem:[%s3 + $0x38] sm:$0xf]
    %v117 = vld [vmem:[%s3 + $0x3c] sm:$0xf]
    %v134 = vunpack.c.l.b16 %v102
    %v135 = vunpack.c.l.b16 %v103
    %v136 = vunpack.c.l.b16 %v104
    %v137 = vunpack.c.l.b16 %v105
    %v138 = vunpack.c.l.b16 %v106
    %v139 = vunpack.c.l.b16 %v107
    %v140 = vunpack.c.l.b16 %v108
    %v141 = vunpack.c.l.b16 %v109
    %v142 = vunpack.c.l.b16 %v110
    %v143 = vunpack.c.l.b16 %v111
    %v144 = vunpack.c.l.b16 %v112
    %v145 = vunpack.c.l.b16 %v113
    %v146 = vunpack.c.l.b16 %v114
    %v147 = vunpack.c.l.b16 %v115
    %v148 = vunpack.c.l.b16 %v116
    %v149 = vunpack.c.l.b16 %v117
    %v150 = vpack.c.b16 %v135, %v134
    %v151 = vpack.c.b16 %v137, %v136
    %v152 = vpack.c.b16 %v139, %v138
    %v153 = vpack.c.b16 %v141, %v140
    %v154 = vpack.c.b16 %v143, %v142
    %v155 = vpack.c.b16 %v145, %v144
    %v156 = vpack.c.b16 %v147, %v146
    %v157 = vpack.c.b16 %v149, %v148
    %166 = vmatpush.bf16.msra.mxu0 %v157
    %167 = vmatpush.bf16.msra.mxu0 %v156
    %168 = vmatpush.bf16.msra.mxu0 %v155
    %169 = vmatpush.bf16.msra.mxu0 %v154
    %170 = vmatpush.bf16.msra.mxu0 %v153
    %171 = vmatpush.bf16.msra.mxu0 %v152
    %172 = vmatpush.bf16.msra.mxu0 %v151
    %173 = vmatpush.bf16.msra.mxu0 %v150
    %174 = vmatmul.bf16.gmra.mxu0 %v101
    %v175 = vpop.f32.mrf.mxu0
    %v176 = vadd.f32 0.0, %v175
    %v177 = vpop.f32.mrf.mxu0
    %v178 = vadd.f32 0.0, %v177
    %179 = vdwg.mxu0
    %v180 = vpack.c.bf16 %v178, %v176
    %v189 = vunpack.c.l.b16 %v56
    %v190 = vunpack.c.l.b16 %v57
    %v191 = vunpack.c.l.b16 %v58
    %v192 = vunpack.c.l.b16 %v59
    %v193 = vunpack.c.l.b16 %v60
    %v194 = vunpack.c.l.b16 %v61
    %v195 = vunpack.c.l.b16 %v62
    %v196 = vunpack.c.l.b16 %v63
    %v197 = vpack.c.b16 %v190, %v189
    %v198 = vpack.c.b16 %v192, %v191
    %v199 = vpack.c.b16 %v194, %v193
    %v200 = vpack.c.b16 %v196, %v195
    %vm201 = vcmask 130048
    %v203 = vsel %vm201, %v197, 0
    %v206 = vsel %vm201, %v198, 0
    %v209 = vsel %vm201, %v199, 0
    %v212 = vsel %vm201, %v200, 0
    %214 = vmatpush.bf16.msra.mxu0 0
    %215 = vmatpush.bf16.msra.mxu0 0
    %216 = vmatpush.bf16.msra.mxu0 0
    %217 = vmatpush.bf16.msra.mxu0 0
    %218 = vmatpush.bf16.msra.mxu0 0
    %219 = vmatpush.bf16.msra.mxu0 0
    %220 = vmatpush.bf16.msra.mxu0 0
    %221 = vmatpush.bf16.msra.mxu0 %v180
    %222 = vmatmul.bf16.gmra.mxu0 %v203
    %v223 = vpop.f32.mrf.mxu0
    %v224 = vadd.f32 0.0, %v223
    %v225 = vpop.f32.mrf.mxu0
    %v226 = vadd.f32 0.0, %v225
    %227 = vmatmul.bf16.gmra.mxu0 %v206
    %v228 = vpop.f32.mrf.mxu0
    %v229 = vadd.f32 0.0, %v228
    %v230 = vpop.f32.mrf.mxu0
    %v231 = vadd.f32 0.0, %v230
    %232 = vmatmul.bf16.gmra.mxu0 %v209
    %v233 = vpop.f32.mrf.mxu0
    %v234 = vadd.f32 0.0, %v233
    %v235 = vpop.f32.mrf.mxu0
    %v236 = vadd.f32 0.0, %v235
    %237 = vmatmul.bf16.gmra.mxu0 %v212
    %v238 = vpop.f32.mrf.mxu0
    %v239 = vadd.f32 0.0, %v238
    %v240 = vpop.f32.mrf.mxu0
    %v241 = vadd.f32 0.0, %v240
    %242 = vdwg.mxu0
    %v243 = vld [vmem:[#allocation4] sm:$0xf]
    %v244 = vld [vmem:[#allocation4 + $0x4] sm:$0xf]
    %v245 = vld [vmem:[#allocation4 + $0x8] sm:$0xf]
    %v246 = vld [vmem:[#allocation4 + $0xc] sm:$0xf]
    %v247 = vld [vmem:[#allocation4 + $0x10] sm:$0xf]
    %v248 = vld [vmem:[#allocation4 + $0x14] sm:$0xf]
    %v249 = vld [vmem:[#allocation4 + $0x18] sm:$0xf]
    %v250 = vld [vmem:[#allocation4 + $0x1c] sm:$0xf]
    %v251 = vld [vmem:[#allocation4 + $0x20] sm:$0xf]
    %v252 = vld [vmem:[#allocation4 + $0x24] sm:$0xf]
    %v253 = vld [vmem:[#allocation4 + $0x28] sm:$0xf]
    %v254 = vld [vmem:[#allocation4 + $0x2c] sm:$0xf]
    %v255 = vld [vmem:[#allocation4 + $0x30] sm:$0xf]
    %v256 = vld [vmem:[#allocation4 + $0x34] sm:$0xf]
    %v257 = vld [vmem:[#allocation4 + $0x38] sm:$0xf]
    %v258 = vld [vmem:[#allocation4 + $0x3c] sm:$0xf]
    %v275 = vunpack.c.l.b16 %v243
    %v276 = vunpack.c.l.b16 %v244
    %v277 = vunpack.c.l.b16 %v245
    %v278 = vunpack.c.l.b16 %v246
    %v279 = vunpack.c.l.b16 %v247
    %v280 = vunpack.c.l.b16 %v248
    %v281 = vunpack.c.l.b16 %v249
    %v282 = vunpack.c.l.b16 %v250
    %v283 = vunpack.c.l.b16 %v251
    %v284 = vunpack.c.l.b16 %v252
    %v285 = vunpack.c.l.b16 %v253
    %v286 = vunpack.c.l.b16 %v254
    %v287 = vunpack.c.l.b16 %v255
    %v288 = vunpack.c.l.b16 %v256
    %v289 = vunpack.c.l.b16 %v257
    %v290 = vunpack.c.l.b16 %v258
    %v291 = vpack.c.b16 %v276, %v275
    %v292 = vpack.c.b16 %v278, %v277
    %v293 = vpack.c.b16 %v280, %v279
    %v294 = vpack.c.b16 %v282, %v281
    %v295 = vpack.c.b16 %v284, %v283
    %v296 = vpack.c.b16 %v286, %v285
    %v297 = vpack.c.b16 %v288, %v287
    %v298 = vpack.c.b16 %v290, %v289
    %307 = vmatpush.bf16.msra.mxu0 %v298
    %308 = vmatpush.bf16.msra.mxu0 %v297
    %309 = vmatpush.bf16.msra.mxu0 %v296
    %310 = vmatpush.bf16.msra.mxu0 %v295
    %311 = vmatpush.bf16.msra.mxu0 %v294
    %312 = vmatpush.bf16.msra.mxu0 %v293
    %313 = vmatpush.bf16.msra.mxu0 %v292
    %314 = vmatpush.bf16.msra.mxu0 %v291
    %315 = vmatmul.bf16.gmra.mxu0 %v74
    %v316 = vpop.f32.mrf.mxu0
    %v317 = vadd.f32 %v224, %v316
    %v318 = vpop.f32.mrf.mxu0
    %v319 = vadd.f32 %v226, %v318
    %320 = vmatmul.bf16.gmra.mxu0 %v75
    %v321 = vpop.f32.mrf.mxu0
    %v322 = vadd.f32 %v229, %v321
    %v323 = vpop.f32.mrf.mxu0
    %v324 = vadd.f32 %v231, %v323
    %325 = vmatmul.bf16.gmra.mxu0 %v76
    %v326 = vpop.f32.mrf.mxu0
    %v327 = vadd.f32 %v234, %v326
    %v328 = vpop.f32.mrf.mxu0
    %v329 = vadd.f32 %v236, %v328
    %330 = vmatmul.bf16.gmra.mxu0 %v77
    %v331 = vpop.f32.mrf.mxu0
    %v332 = vadd.f32 %v239, %v331
    %v333 = vpop.f32.mrf.mxu0
    %v334 = vadd.f32 %v241, %v333
    %335 = vdwg.mxu0
    %v336 = vld [vmem:[%s4] sm:$0x1]
    %v338 = vperm.slane %v336, 0
    %v340 = vadd.f32 %v317, %v338
    %v341 = vadd.f32 %v319, %v338
    %v342 = vadd.f32 %v322, %v338
    %v343 = vadd.f32 %v324, %v338
    %v344 = vadd.f32 %v327, %v338
    %v345 = vadd.f32 %v329, %v338
    %v346 = vadd.f32 %v332, %v338
    %v347 = vadd.f32 %v334, %v338
    %v348 = vmax.f32 %v340, 0.0
    %v349 = vmax.f32 %v341, 0.0
    %v350 = vmax.f32 %v342, 0.0
    %v351 = vmax.f32 %v343, 0.0
    %v352 = vmax.f32 %v344, 0.0
    %v353 = vmax.f32 %v345, 0.0
    %v354 = vmax.f32 %v346, 0.0
    %v355 = vmax.f32 %v347, 0.0
    %v356 = vmul.f32 %v348, %v348
    %v357 = vmul.f32 %v349, %v349
    %v358 = vmul.f32 %v350, %v350
    %v359 = vmul.f32 %v351, %v351
    %v360 = vmul.f32 %v352, %v352
    %v361 = vmul.f32 %v353, %v353
    %v362 = vmul.f32 %v354, %v354
    %v363 = vmul.f32 %v355, %v355
    %364 = vadd.xlane.f32.xlu0 %v356
    %v365 = vpop.xlane.xlu0 %364
    %366 = vadd.xlane.f32.xlu0 %v357
    %v367 = vpop.xlane.xlu0 %366
    %368 = vadd.xlane.f32.xlu0 %v358
    %v369 = vpop.xlane.xlu0 %368
    %370 = vadd.xlane.f32.xlu0 %v359
    %v371 = vpop.xlane.xlu0 %370
    %372 = vadd.xlane.f32.xlu0 %v360
    %v373 = vpop.xlane.xlu0 %372
    %374 = vadd.xlane.f32.xlu0 %v361
    %v375 = vpop.xlane.xlu0 %374
    %376 = vadd.xlane.f32.xlu0 %v362
    %v377 = vpop.xlane.xlu0 %376
    %378 = vadd.xlane.f32.xlu0 %v363
    %v379 = vpop.xlane.xlu0 %378
    %v380 = vmax.f32 %v365, 1e-24
    %v381 = vmax.f32 %v367, 1e-24
    %v382 = vmax.f32 %v369, 1e-24
    %v383 = vmax.f32 %v371, 1e-24
    %v384 = vmax.f32 %v373, 1e-24
    %v385 = vmax.f32 %v375, 1e-24
    %v386 = vmax.f32 %v377, 1e-24
    %v387 = vmax.f32 %v379, 1e-24
    %v388 = vrsqrt.pop %v380
    %v389 = vmul.f32 %v388, %v380
    %v390 = vmul.f32 %v389, %v388
    %v391 = vmul.f32 0.5, %v390
    %v392 = vsub.f32 1.5, %v391
    %v393 = vmul.f32 %v388, %v392
    %vm394 = vweird.f32 %v380
    %vm395 = vweird.f32 %v388
    %vm396 = vmor %vm394, %vm395
    %v397 = vsel %vm396, %v388, %v393
    %v398 = vrsqrt.pop %v381
    %v399 = vmul.f32 %v398, %v381
    %v400 = vmul.f32 %v399, %v398
    %v401 = vmul.f32 0.5, %v400
    %v402 = vsub.f32 1.5, %v401
    %v403 = vmul.f32 %v398, %v402
    %vm404 = vweird.f32 %v381
    %vm405 = vweird.f32 %v398
    %vm406 = vmor %vm404, %vm405
    %v407 = vsel %vm406, %v398, %v403
    %v408 = vrsqrt.pop %v382
    %v409 = vmul.f32 %v408, %v382
    %v410 = vmul.f32 %v409, %v408
    %v411 = vmul.f32 0.5, %v410
    %v412 = vsub.f32 1.5, %v411
    %v413 = vmul.f32 %v408, %v412
    %vm414 = vweird.f32 %v382
    %vm415 = vweird.f32 %v408
    %vm416 = vmor %vm414, %vm415
    %v417 = vsel %vm416, %v408, %v413
    %v418 = vrsqrt.pop %v383
    %v419 = vmul.f32 %v418, %v383
    %v420 = vmul.f32 %v419, %v418
    %v421 = vmul.f32 0.5, %v420
    %v422 = vsub.f32 1.5, %v421
    %v423 = vmul.f32 %v418, %v422
    %vm424 = vweird.f32 %v383
    %vm425 = vweird.f32 %v418
    %vm426 = vmor %vm424, %vm425
    %v427 = vsel %vm426, %v418, %v423
    %v428 = vrsqrt.pop %v384
    %v429 = vmul.f32 %v428, %v384
    %v430 = vmul.f32 %v429, %v428
    %v431 = vmul.f32 0.5, %v430
    %v432 = vsub.f32 1.5, %v431
    %v433 = vmul.f32 %v428, %v432
    %vm434 = vweird.f32 %v384
    %vm435 = vweird.f32 %v428
    %vm436 = vmor %vm434, %vm435
    %v437 = vsel %vm436, %v428, %v433
    %v438 = vrsqrt.pop %v385
    %v439 = vmul.f32 %v438, %v385
    %v440 = vmul.f32 %v439, %v438
    %v441 = vmul.f32 0.5, %v440
    %v442 = vsub.f32 1.5, %v441
    %v443 = vmul.f32 %v438, %v442
    %vm444 = vweird.f32 %v385
    %vm445 = vweird.f32 %v438
    %vm446 = vmor %vm444, %vm445
    %v447 = vsel %vm446, %v438, %v443
    %v448 = vrsqrt.pop %v386
    %v449 = vmul.f32 %v448, %v386
    %v450 = vmul.f32 %v449, %v448
    %v451 = vmul.f32 0.5, %v450
    %v452 = vsub.f32 1.5, %v451
    %v453 = vmul.f32 %v448, %v452
    %vm454 = vweird.f32 %v386
    %vm455 = vweird.f32 %v448
    %vm456 = vmor %vm454, %vm455
    %v457 = vsel %vm456, %v448, %v453
    %v458 = vrsqrt.pop %v387
    %v459 = vmul.f32 %v458, %v387
    %v460 = vmul.f32 %v459, %v458
    %v461 = vmul.f32 0.5, %v460
    %v462 = vsub.f32 1.5, %v461
    %v463 = vmul.f32 %v458, %v462
    %vm464 = vweird.f32 %v387
    %vm465 = vweird.f32 %v458
    %vm466 = vmor %vm464, %vm465
    %v467 = vsel %vm466, %v458, %v463
    %v468 = vmul.f32 %v348, %v397
    %v469 = vmul.f32 %v349, %v407
    %v470 = vmul.f32 %v350, %v417
    %v471 = vmul.f32 %v351, %v427
    %v472 = vmul.f32 %v352, %v437
    %v473 = vmul.f32 %v353, %v447
    %v474 = vmul.f32 %v354, %v457
    %v475 = vmul.f32 %v355, %v467
    %v476 = vpack.c.bf16 %v469, %v468
    %v477 = vpack.c.bf16 %v471, %v470
    %v478 = vpack.c.bf16 %v473, %v472
    %v479 = vpack.c.bf16 %v475, %v474
    %480 = vmatpush.bf16.msra.mxu0 0
    %481 = vmatpush.bf16.msra.mxu0 0
    %482 = vmatpush.bf16.msra.mxu0 0
    %483 = vmatpush.bf16.msra.mxu0 0
    %484 = vmatpush.bf16.msra.mxu0 %v479
    %485 = vmatpush.bf16.msra.mxu0 %v478
    %486 = vmatpush.bf16.msra.mxu0 %v477
    %487 = vmatpush.bf16.msra.mxu0 %v476
    %488 = vmatmul.bf16.gmra.mxu0 %v85
    %v489 = vpop.f32.mrf.mxu0
    %v490 = vadd.f32 0.0, %v489
    %v491 = vpop.f32.mrf.mxu0
    %v492 = vadd.f32 0.0, %v491
    %493 = vdwg.mxu0
    %v494 = vpack.c.bf16 %v492, %v490
    %s495 = scalar_lea.vmem %s3, 64
    %v496 = vld [vmem:[%s495] sm:$0xf]
    %v497 = vld [vmem:[%s495 + $0x4] sm:$0xf]
    %v498 = vld [vmem:[%s495 + $0x8] sm:$0xf]
    %v499 = vld [vmem:[%s495 + $0xc] sm:$0xf]
    %v500 = vld [vmem:[%s495 + $0x10] sm:$0xf]
    %v501 = vld [vmem:[%s495 + $0x14] sm:$0xf]
    %v502 = vld [vmem:[%s495 + $0x18] sm:$0xf]
    %v503 = vld [vmem:[%s495 + $0x1c] sm:$0xf]
    %v504 = vld [vmem:[%s495 + $0x20] sm:$0xf]
    %v505 = vld [vmem:[%s495 + $0x24] sm:$0xf]
    %v506 = vld [vmem:[%s495 + $0x28] sm:$0xf]
    %v507 = vld [vmem:[%s495 + $0x2c] sm:$0xf]
    %v508 = vld [vmem:[%s495 + $0x30] sm:$0xf]
    %v509 = vld [vmem:[%s495 + $0x34] sm:$0xf]
    %v510 = vld [vmem:[%s495 + $0x38] sm:$0xf]
    %v511 = vld [vmem:[%s495 + $0x3c] sm:$0xf]
    %v528 = vunpack.c.l.b16 %v496
    %v529 = vunpack.c.l.b16 %v497
    %v530 = vunpack.c.l.b16 %v498
    %v531 = vunpack.c.l.b16 %v499
    %v532 = vunpack.c.l.b16 %v500
    %v533 = vunpack.c.l.b16 %v501
    %v534 = vunpack.c.l.b16 %v502
    %v535 = vunpack.c.l.b16 %v503
    %v536 = vunpack.c.l.b16 %v504
    %v537 = vunpack.c.l.b16 %v505
    %v538 = vunpack.c.l.b16 %v506
    %v539 = vunpack.c.l.b16 %v507
    %v540 = vunpack.c.l.b16 %v508
    %v541 = vunpack.c.l.b16 %v509
    %v542 = vunpack.c.l.b16 %v510
    %v543 = vunpack.c.l.b16 %v511
    %v544 = vpack.c.b16 %v529, %v528
    %v545 = vpack.c.b16 %v531, %v530
    %v546 = vpack.c.b16 %v533, %v532
    %v547 = vpack.c.b16 %v535, %v534
    %v548 = vpack.c.b16 %v537, %v536
    %v549 = vpack.c.b16 %v539, %v538
    %v550 = vpack.c.b16 %v541, %v540
    %v551 = vpack.c.b16 %v543, %v542
    %560 = vmatpush.bf16.msra.mxu0 %v551
    %561 = vmatpush.bf16.msra.mxu0 %v550
    %562 = vmatpush.bf16.msra.mxu0 %v549
    %563 = vmatpush.bf16.msra.mxu0 %v548
    %564 = vmatpush.bf16.msra.mxu0 %v547
    %565 = vmatpush.bf16.msra.mxu0 %v546
    %566 = vmatpush.bf16.msra.mxu0 %v545
    %567 = vmatpush.bf16.msra.mxu0 %v544
    %568 = vmatmul.bf16.gmra.mxu0 %v494
    %v569 = vpop.f32.mrf.mxu0
    %v570 = vadd.f32 0.0, %v569
    %v571 = vpop.f32.mrf.mxu0
    %v572 = vadd.f32 0.0, %v571
    %573 = vdwg.mxu0
    %v574 = vpack.c.bf16 %v572, %v570
    %575 = vmatpush.bf16.msra.mxu0 0
    %576 = vmatpush.bf16.msra.mxu0 0
    %577 = vmatpush.bf16.msra.mxu0 0
    %578 = vmatpush.bf16.msra.mxu0 0
    %579 = vmatpush.bf16.msra.mxu0 0
    %580 = vmatpush.bf16.msra.mxu0 0
    %581 = vmatpush.bf16.msra.mxu0 0
    %582 = vmatpush.bf16.msra.mxu0 %v574
    %583 = vmatmul.bf16.gmra.mxu0 %v203
    %v584 = vpop.f32.mrf.mxu0
    %v585 = vadd.f32 0.0, %v584
    %v586 = vpop.f32.mrf.mxu0
    %v587 = vadd.f32 0.0, %v586
    %588 = vmatmul.bf16.gmra.mxu0 %v206
    %v589 = vpop.f32.mrf.mxu0
    %v590 = vadd.f32 0.0, %v589
    %v591 = vpop.f32.mrf.mxu0
    %v592 = vadd.f32 0.0, %v591
    %593 = vmatmul.bf16.gmra.mxu0 %v209
    %v594 = vpop.f32.mrf.mxu0
    %v595 = vadd.f32 0.0, %v594
    %v596 = vpop.f32.mrf.mxu0
    %v597 = vadd.f32 0.0, %v596
    %598 = vmatmul.bf16.gmra.mxu0 %v212
    %v599 = vpop.f32.mrf.mxu0
    %v600 = vadd.f32 0.0, %v599
    %v601 = vpop.f32.mrf.mxu0
    %v602 = vadd.f32 0.0, %v601
    %603 = vdwg.mxu0
    %s604 = scalar_lea.vmem [#allocation4], 64
    %v605 = vld [vmem:[%s604] sm:$0xf]
    %v606 = vld [vmem:[%s604 + $0x4] sm:$0xf]
    %v607 = vld [vmem:[%s604 + $0x8] sm:$0xf]
    %v608 = vld [vmem:[%s604 + $0xc] sm:$0xf]
    %v609 = vld [vmem:[%s604 + $0x10] sm:$0xf]
    %v610 = vld [vmem:[%s604 + $0x14] sm:$0xf]
    %v611 = vld [vmem:[%s604 + $0x18] sm:$0xf]
    %v612 = vld [vmem:[%s604 + $0x1c] sm:$0xf]
    %v613 = vld [vmem:[%s604 + $0x20] sm:$0xf]
    %v614 = vld [vmem:[%s604 + $0x24] sm:$0xf]
    %v615 = vld [vmem:[%s604 + $0x28] sm:$0xf]
    %v616 = vld [vmem:[%s604 + $0x2c] sm:$0xf]
    %v617 = vld [vmem:[%s604 + $0x30] sm:$0xf]
    %v618 = vld [vmem:[%s604 + $0x34] sm:$0xf]
    %v619 = vld [vmem:[%s604 + $0x38] sm:$0xf]
    %v620 = vld [vmem:[%s604 + $0x3c] sm:$0xf]
    %v637 = vunpack.c.l.b16 %v605
    %v638 = vunpack.c.l.b16 %v606
    %v639 = vunpack.c.l.b16 %v607
    %v640 = vunpack.c.l.b16 %v608
    %v641 = vunpack.c.l.b16 %v609
    %v642 = vunpack.c.l.b16 %v610
    %v643 = vunpack.c.l.b16 %v611
    %v644 = vunpack.c.l.b16 %v612
    %v645 = vunpack.c.l.b16 %v613
    %v646 = vunpack.c.l.b16 %v614
    %v647 = vunpack.c.l.b16 %v615
    %v648 = vunpack.c.l.b16 %v616
    %v649 = vunpack.c.l.b16 %v617
    %v650 = vunpack.c.l.b16 %v618
    %v651 = vunpack.c.l.b16 %v619
    %v652 = vunpack.c.l.b16 %v620
    %v653 = vpack.c.b16 %v638, %v637
    %v654 = vpack.c.b16 %v640, %v639
    %v655 = vpack.c.b16 %v642, %v641
    %v656 = vpack.c.b16 %v644, %v643
    %v657 = vpack.c.b16 %v646, %v645
    %v658 = vpack.c.b16 %v648, %v647
    %v659 = vpack.c.b16 %v650, %v649
    %v660 = vpack.c.b16 %v652, %v651
    %669 = vmatpush.bf16.msra.mxu0 %v660
    %670 = vmatpush.bf16.msra.mxu0 %v659
    %671 = vmatpush.bf16.msra.mxu0 %v658
    %672 = vmatpush.bf16.msra.mxu0 %v657
    %673 = vmatpush.bf16.msra.mxu0 %v656
    %674 = vmatpush.bf16.msra.mxu0 %v655
    %675 = vmatpush.bf16.msra.mxu0 %v654
    %676 = vmatpush.bf16.msra.mxu0 %v653
    %677 = vmatmul.bf16.gmra.mxu0 %v476
    %v678 = vpop.f32.mrf.mxu0
    %v679 = vadd.f32 %v585, %v678
    %v680 = vpop.f32.mrf.mxu0
    %v681 = vadd.f32 %v587, %v680
    %682 = vmatmul.bf16.gmra.mxu0 %v477
    %v683 = vpop.f32.mrf.mxu0
    %v684 = vadd.f32 %v590, %v683
    %v685 = vpop.f32.mrf.mxu0
    %v686 = vadd.f32 %v592, %v685
    %687 = vmatmul.bf16.gmra.mxu0 %v478
    %v688 = vpop.f32.mrf.mxu0
    %v689 = vadd.f32 %v595, %v688
    %v690 = vpop.f32.mrf.mxu0
    %v691 = vadd.f32 %v597, %v690
    %692 = vmatmul.bf16.gmra.mxu0 %v479
    %v693 = vpop.f32.mrf.mxu0
    %v694 = vadd.f32 %v600, %v693
    %v695 = vpop.f32.mrf.mxu0
    %v696 = vadd.f32 %v602, %v695
    %697 = vdwg.mxu0
    %s698 = scalar_lea.vmem %s4, 1
    %v699 = vld [vmem:[%s698] sm:$0x1]
    %v701 = vperm.slane %v699, 0
    %v703 = vadd.f32 %v679, %v701
    %v704 = vadd.f32 %v681, %v701
    %v705 = vadd.f32 %v684, %v701
    %v706 = vadd.f32 %v686, %v701
    %v707 = vadd.f32 %v689, %v701
    %v708 = vadd.f32 %v691, %v701
    %v709 = vadd.f32 %v694, %v701
    %v710 = vadd.f32 %v696, %v701
    %v711 = vmax.f32 %v703, 0.0
    %v712 = vmax.f32 %v704, 0.0
    %v713 = vmax.f32 %v705, 0.0
    %v714 = vmax.f32 %v706, 0.0
    %v715 = vmax.f32 %v707, 0.0
    %v716 = vmax.f32 %v708, 0.0
    %v717 = vmax.f32 %v709, 0.0
    %v718 = vmax.f32 %v710, 0.0
    %v719 = vmul.f32 %v711, %v711
    %v720 = vmul.f32 %v712, %v712
    %v721 = vmul.f32 %v713, %v713
    %v722 = vmul.f32 %v714, %v714
    %v723 = vmul.f32 %v715, %v715
    %v724 = vmul.f32 %v716, %v716
    %v725 = vmul.f32 %v717, %v717
    %v726 = vmul.f32 %v718, %v718
    %727 = vadd.xlane.f32.xlu0 %v719
    %v728 = vpop.xlane.xlu0 %727
    %729 = vadd.xlane.f32.xlu0 %v720
    %v730 = vpop.xlane.xlu0 %729
    %731 = vadd.xlane.f32.xlu0 %v721
    %v732 = vpop.xlane.xlu0 %731
    %733 = vadd.xlane.f32.xlu0 %v722
    %v734 = vpop.xlane.xlu0 %733
    %735 = vadd.xlane.f32.xlu0 %v723
    %v736 = vpop.xlane.xlu0 %735
    %737 = vadd.xlane.f32.xlu0 %v724
    %v738 = vpop.xlane.xlu0 %737
    %739 = vadd.xlane.f32.xlu0 %v725
    %v740 = vpop.xlane.xlu0 %739
    %741 = vadd.xlane.f32.xlu0 %v726
    %v742 = vpop.xlane.xlu0 %741
    %v743 = vmax.f32 %v728, 1e-24
    %v744 = vmax.f32 %v730, 1e-24
    %v745 = vmax.f32 %v732, 1e-24
    %v746 = vmax.f32 %v734, 1e-24
    %v747 = vmax.f32 %v736, 1e-24
    %v748 = vmax.f32 %v738, 1e-24
    %v749 = vmax.f32 %v740, 1e-24
    %v750 = vmax.f32 %v742, 1e-24
    %v751 = vrsqrt.pop %v743
    %v752 = vmul.f32 %v751, %v743
    %v753 = vmul.f32 %v752, %v751
    %v754 = vmul.f32 0.5, %v753
    %v755 = vsub.f32 1.5, %v754
    %v756 = vmul.f32 %v751, %v755
    %vm757 = vweird.f32 %v743
    %vm758 = vweird.f32 %v751
    %vm759 = vmor %vm757, %vm758
    %v760 = vsel %vm759, %v751, %v756
    %v761 = vrsqrt.pop %v744
    %v762 = vmul.f32 %v761, %v744
    %v763 = vmul.f32 %v762, %v761
    %v764 = vmul.f32 0.5, %v763
    %v765 = vsub.f32 1.5, %v764
    %v766 = vmul.f32 %v761, %v765
    %vm767 = vweird.f32 %v744
    %vm768 = vweird.f32 %v761
    %vm769 = vmor %vm767, %vm768
    %v770 = vsel %vm769, %v761, %v766
    %v771 = vrsqrt.pop %v745
    %v772 = vmul.f32 %v771, %v745
    %v773 = vmul.f32 %v772, %v771
    %v774 = vmul.f32 0.5, %v773
    %v775 = vsub.f32 1.5, %v774
    %v776 = vmul.f32 %v771, %v775
    %vm777 = vweird.f32 %v745
    %vm778 = vweird.f32 %v771
    %vm779 = vmor %vm777, %vm778
    %v780 = vsel %vm779, %v771, %v776
    %v781 = vrsqrt.pop %v746
    %v782 = vmul.f32 %v781, %v746
    %v783 = vmul.f32 %v782, %v781
    %v784 = vmul.f32 0.5, %v783
    %v785 = vsub.f32 1.5, %v784
    %v786 = vmul.f32 %v781, %v785
    %vm787 = vweird.f32 %v746
    %vm788 = vweird.f32 %v781
    %vm789 = vmor %vm787, %vm788
    %v790 = vsel %vm789, %v781, %v786
    %v791 = vrsqrt.pop %v747
    %v792 = vmul.f32 %v791, %v747
    %v793 = vmul.f32 %v792, %v791
    %v794 = vmul.f32 0.5, %v793
    %v795 = vsub.f32 1.5, %v794
    %v796 = vmul.f32 %v791, %v795
    %vm797 = vweird.f32 %v747
    %vm798 = vweird.f32 %v791
    %vm799 = vmor %vm797, %vm798
    %v800 = vsel %vm799, %v791, %v796
    %v801 = vrsqrt.pop %v748
    %v802 = vmul.f32 %v801, %v748
    %v803 = vmul.f32 %v802, %v801
    %v804 = vmul.f32 0.5, %v803
    %v805 = vsub.f32 1.5, %v804
    %v806 = vmul.f32 %v801, %v805
    %vm807 = vweird.f32 %v748
    %vm808 = vweird.f32 %v801
    %vm809 = vmor %vm807, %vm808
    %v810 = vsel %vm809, %v801, %v806
    %v811 = vrsqrt.pop %v749
    %v812 = vmul.f32 %v811, %v749
    %v813 = vmul.f32 %v812, %v811
    %v814 = vmul.f32 0.5, %v813
    %v815 = vsub.f32 1.5, %v814
    %v816 = vmul.f32 %v811, %v815
    %vm817 = vweird.f32 %v749
    %vm818 = vweird.f32 %v811
    %vm819 = vmor %vm817, %vm818
    %v820 = vsel %vm819, %v811, %v816
    %v821 = vrsqrt.pop %v750
    %v822 = vmul.f32 %v821, %v750
    %v823 = vmul.f32 %v822, %v821
    %v824 = vmul.f32 0.5, %v823
    %v825 = vsub.f32 1.5, %v824
    %v826 = vmul.f32 %v821, %v825
    %vm827 = vweird.f32 %v750
    %vm828 = vweird.f32 %v821
    %vm829 = vmor %vm827, %vm828
    %v830 = vsel %vm829, %v821, %v826
    %v831 = vmul.f32 %v711, %v760
    %v832 = vmul.f32 %v712, %v770
    %v833 = vmul.f32 %v713, %v780
    %v834 = vmul.f32 %v714, %v790
    %v835 = vmul.f32 %v715, %v800
    %v836 = vmul.f32 %v716, %v810
    %v837 = vmul.f32 %v717, %v820
    %v838 = vmul.f32 %v718, %v830
    %v839 = vpack.c.bf16 %v832, %v831
    %v840 = vpack.c.bf16 %v834, %v833
    %v841 = vpack.c.bf16 %v836, %v835
    %v842 = vpack.c.bf16 %v838, %v837
    %843 = vmatpush.bf16.msra.mxu0 0
    %844 = vmatpush.bf16.msra.mxu0 0
    %845 = vmatpush.bf16.msra.mxu0 0
    %846 = vmatpush.bf16.msra.mxu0 0
    %847 = vmatpush.bf16.msra.mxu0 %v842
    %848 = vmatpush.bf16.msra.mxu0 %v841
    %849 = vmatpush.bf16.msra.mxu0 %v840
    %850 = vmatpush.bf16.msra.mxu0 %v839
    %851 = vmatmul.bf16.gmra.mxu0 %v85
    %v852 = vpop.f32.mrf.mxu0
    %v853 = vadd.f32 0.0, %v852
    %v854 = vpop.f32.mrf.mxu0
    %v855 = vadd.f32 0.0, %v854
    %856 = vdwg.mxu0
    %v857 = vpack.c.bf16 %v855, %v853
    %s858 = scalar_lea.vmem %s3, 128
    %v859 = vld [vmem:[%s858] sm:$0xf]
    %v860 = vld [vmem:[%s858 + $0x4] sm:$0xf]
    %v861 = vld [vmem:[%s858 + $0x8] sm:$0xf]
    %v862 = vld [vmem:[%s858 + $0xc] sm:$0xf]
    %v863 = vld [vmem:[%s858 + $0x10] sm:$0xf]
    %v864 = vld [vmem:[%s858 + $0x14] sm:$0xf]
    %v865 = vld [vmem:[%s858 + $0x18] sm:$0xf]
    %v866 = vld [vmem:[%s858 + $0x1c] sm:$0xf]
    %v867 = vld [vmem:[%s858 + $0x20] sm:$0xf]
    %v868 = vld [vmem:[%s858 + $0x24] sm:$0xf]
    %v869 = vld [vmem:[%s858 + $0x28] sm:$0xf]
    %v870 = vld [vmem:[%s858 + $0x2c] sm:$0xf]
    %v871 = vld [vmem:[%s858 + $0x30] sm:$0xf]
    %v872 = vld [vmem:[%s858 + $0x34] sm:$0xf]
    %v873 = vld [vmem:[%s858 + $0x38] sm:$0xf]
    %v874 = vld [vmem:[%s858 + $0x3c] sm:$0xf]
    %v891 = vunpack.c.l.b16 %v859
    %v892 = vunpack.c.l.b16 %v860
    %v893 = vunpack.c.l.b16 %v861
    %v894 = vunpack.c.l.b16 %v862
    %v895 = vunpack.c.l.b16 %v863
    %v896 = vunpack.c.l.b16 %v864
    %v897 = vunpack.c.l.b16 %v865
    %v898 = vunpack.c.l.b16 %v866
    %v899 = vunpack.c.l.b16 %v867
    %v900 = vunpack.c.l.b16 %v868
    %v901 = vunpack.c.l.b16 %v869
    %v902 = vunpack.c.l.b16 %v870
    %v903 = vunpack.c.l.b16 %v871
    %v904 = vunpack.c.l.b16 %v872
    %v905 = vunpack.c.l.b16 %v873
    %v906 = vunpack.c.l.b16 %v874
    %v907 = vpack.c.b16 %v892, %v891
    %v908 = vpack.c.b16 %v894, %v893
    %v909 = vpack.c.b16 %v896, %v895
    %v910 = vpack.c.b16 %v898, %v897
    %v911 = vpack.c.b16 %v900, %v899
    %v912 = vpack.c.b16 %v902, %v901
    %v913 = vpack.c.b16 %v904, %v903
    %v914 = vpack.c.b16 %v906, %v905
    %923 = vmatpush.bf16.msra.mxu0 %v914
    %924 = vmatpush.bf16.msra.mxu0 %v913
    %925 = vmatpush.bf16.msra.mxu0 %v912
    %926 = vmatpush.bf16.msra.mxu0 %v911
    %927 = vmatpush.bf16.msra.mxu0 %v910
    %928 = vmatpush.bf16.msra.mxu0 %v909
    %929 = vmatpush.bf16.msra.mxu0 %v908
    %930 = vmatpush.bf16.msra.mxu0 %v907
    %931 = vmatmul.bf16.gmra.mxu0 %v857
    %v932 = vpop.f32.mrf.mxu0
    %v933 = vadd.f32 0.0, %v932
    %v934 = vpop.f32.mrf.mxu0
    %v935 = vadd.f32 0.0, %v934
    %936 = vdwg.mxu0
    %v937 = vpack.c.bf16 %v935, %v933
    %938 = vmatpush.bf16.msra.mxu0 0
    %939 = vmatpush.bf16.msra.mxu0 0
    %940 = vmatpush.bf16.msra.mxu0 0
    %941 = vmatpush.bf16.msra.mxu0 0
    %942 = vmatpush.bf16.msra.mxu0 0
    %943 = vmatpush.bf16.msra.mxu0 0
    %944 = vmatpush.bf16.msra.mxu0 0
    %945 = vmatpush.bf16.msra.mxu0 %v937
    %946 = vmatmul.bf16.gmra.mxu0 %v203
    %v947 = vpop.f32.mrf.mxu0
    %v948 = vadd.f32 0.0, %v947
    %v949 = vpop.f32.mrf.mxu0
    %v950 = vadd.f32 0.0, %v949
    %951 = vmatmul.bf16.gmra.mxu0 %v206
    %v952 = vpop.f32.mrf.mxu0
    %v953 = vadd.f32 0.0, %v952
    %v954 = vpop.f32.mrf.mxu0
    %v955 = vadd.f32 0.0, %v954
    %956 = vmatmul.bf16.gmra.mxu0 %v209
    %v957 = vpop.f32.mrf.mxu0
    %v958 = vadd.f32 0.0, %v957
    %v959 = vpop.f32.mrf.mxu0
    %v960 = vadd.f32 0.0, %v959
    %961 = vmatmul.bf16.gmra.mxu0 %v212
    %v962 = vpop.f32.mrf.mxu0
    %v963 = vadd.f32 0.0, %v962
    %v964 = vpop.f32.mrf.mxu0
    %v965 = vadd.f32 0.0, %v964
    %966 = vdwg.mxu0
    %s967 = scalar_lea.vmem [#allocation4], 128
    %v968 = vld [vmem:[%s967] sm:$0xf]
    %v969 = vld [vmem:[%s967 + $0x4] sm:$0xf]
    %v970 = vld [vmem:[%s967 + $0x8] sm:$0xf]
    %v971 = vld [vmem:[%s967 + $0xc] sm:$0xf]
    %v972 = vld [vmem:[%s967 + $0x10] sm:$0xf]
    %v973 = vld [vmem:[%s967 + $0x14] sm:$0xf]
    %v974 = vld [vmem:[%s967 + $0x18] sm:$0xf]
    %v975 = vld [vmem:[%s967 + $0x1c] sm:$0xf]
    %v976 = vld [vmem:[%s967 + $0x20] sm:$0xf]
    %v977 = vld [vmem:[%s967 + $0x24] sm:$0xf]
    %v978 = vld [vmem:[%s967 + $0x28] sm:$0xf]
    %v979 = vld [vmem:[%s967 + $0x2c] sm:$0xf]
    %v980 = vld [vmem:[%s967 + $0x30] sm:$0xf]
    %v981 = vld [vmem:[%s967 + $0x34] sm:$0xf]
    %v982 = vld [vmem:[%s967 + $0x38] sm:$0xf]
    %v983 = vld [vmem:[%s967 + $0x3c] sm:$0xf]
    %v1000 = vunpack.c.l.b16 %v968
    %v1001 = vunpack.c.l.b16 %v969
    %v1002 = vunpack.c.l.b16 %v970
    %v1003 = vunpack.c.l.b16 %v971
    %v1004 = vunpack.c.l.b16 %v972
    %v1005 = vunpack.c.l.b16 %v973
    %v1006 = vunpack.c.l.b16 %v974
    %v1007 = vunpack.c.l.b16 %v975
    %v1008 = vunpack.c.l.b16 %v976
    %v1009 = vunpack.c.l.b16 %v977
    %v1010 = vunpack.c.l.b16 %v978
    %v1011 = vunpack.c.l.b16 %v979
    %v1012 = vunpack.c.l.b16 %v980
    %v1013 = vunpack.c.l.b16 %v981
    %v1014 = vunpack.c.l.b16 %v982
    %v1015 = vunpack.c.l.b16 %v983
    %v1016 = vpack.c.b16 %v1001, %v1000
    %v1017 = vpack.c.b16 %v1003, %v1002
    %v1018 = vpack.c.b16 %v1005, %v1004
    %v1019 = vpack.c.b16 %v1007, %v1006
    %v1020 = vpack.c.b16 %v1009, %v1008
    %v1021 = vpack.c.b16 %v1011, %v1010
    %v1022 = vpack.c.b16 %v1013, %v1012
    %v1023 = vpack.c.b16 %v1015, %v1014
    %1032 = vmatpush.bf16.msra.mxu0 %v1023
    %1033 = vmatpush.bf16.msra.mxu0 %v1022
    %1034 = vmatpush.bf16.msra.mxu0 %v1021
    %1035 = vmatpush.bf16.msra.mxu0 %v1020
    %1036 = vmatpush.bf16.msra.mxu0 %v1019
    %1037 = vmatpush.bf16.msra.mxu0 %v1018
    %1038 = vmatpush.bf16.msra.mxu0 %v1017
    %1039 = vmatpush.bf16.msra.mxu0 %v1016
    %1040 = vmatmul.bf16.gmra.mxu0 %v839
    %v1041 = vpop.f32.mrf.mxu0
    %v1042 = vadd.f32 %v948, %v1041
    %v1043 = vpop.f32.mrf.mxu0
    %v1044 = vadd.f32 %v950, %v1043
    %1045 = vmatmul.bf16.gmra.mxu0 %v840
    %v1046 = vpop.f32.mrf.mxu0
    %v1047 = vadd.f32 %v953, %v1046
    %v1048 = vpop.f32.mrf.mxu0
    %v1049 = vadd.f32 %v955, %v1048
    %1050 = vmatmul.bf16.gmra.mxu0 %v841
    %v1051 = vpop.f32.mrf.mxu0
    %v1052 = vadd.f32 %v958, %v1051
    %v1053 = vpop.f32.mrf.mxu0
    %v1054 = vadd.f32 %v960, %v1053
    %1055 = vmatmul.bf16.gmra.mxu0 %v842
    %v1056 = vpop.f32.mrf.mxu0
    %v1057 = vadd.f32 %v963, %v1056
    %v1058 = vpop.f32.mrf.mxu0
    %v1059 = vadd.f32 %v965, %v1058
    %1060 = vdwg.mxu0
    %s1061 = scalar_lea.vmem %s4, 2
    %v1062 = vld [vmem:[%s1061] sm:$0x1]
    %v1064 = vperm.slane %v1062, 0
    %v1066 = vadd.f32 %v1042, %v1064
    %v1067 = vadd.f32 %v1044, %v1064
    %v1068 = vadd.f32 %v1047, %v1064
    %v1069 = vadd.f32 %v1049, %v1064
    %v1070 = vadd.f32 %v1052, %v1064
    %v1071 = vadd.f32 %v1054, %v1064
    %v1072 = vadd.f32 %v1057, %v1064
    %v1073 = vadd.f32 %v1059, %v1064
    %1074 = vst [vmem:[%s6] sm:$0xff] %v1066
    %1075 = vst [vmem:[%s6 + $0x8] sm:$0xff] %v1067
    %1076 = vst [vmem:[%s6 + $0x10] sm:$0xff] %v1068
    %1077 = vst [vmem:[%s6 + $0x18] sm:$0xff] %v1069
    %1078 = vst [vmem:[%s6 + $0x20] sm:$0xff] %v1070
    %1079 = vst [vmem:[%s6 + $0x28] sm:$0xff] %v1071
    %1080 = vst [vmem:[%s6 + $0x30] sm:$0xff] %v1072
    %1081 = vst [vmem:[%s6 + $0x38] sm:$0xff] %v1073
    // Predicated region
    $region34: #{_lambda_.1} parent=1 // pred_check
      _
    $region35: #{_lambda_.1} parent=1 // pred_check_branch
      %1083 = sbr.rel (0) target = $region37
    $region36: #{_lambda_.1} parent=1 // pred_region
      _
    $region37: #{_lambda_.1} parent=1 // pred_fallthru
      _
    // Predicated region
    $region38: #{_lambda_.1} parent=1 // pred_check
      _
    $region39: #{_lambda_.1} parent=1 // pred_check_branch
      %1085 = sbr.rel (0) target = $region41
    $region40: #{_lambda_.1} parent=1 // pred_region
      _
    $region41: #{_lambda_.1} parent=1 // pred_fallthru
      _
    %1086 = vsyncpa [#allocation3], 1
    %1087 = vsyncpa [#allocation5], 1

</llo_original>
